<compile_context>
chip_gen: v7x
topology: tpu7x:2x2x1
jax: 0.10.0
libtpu: 0.0.40
codegen_flags: <defaults>
</compile_context>

<pallas_src>
import functools

import jax
import jax.numpy as jnp
from jax.experimental import pallas as pl
from jax.experimental.pallas import tpu as pltpu

BN_EPS = 1e-5
LANE = 128
SUBLANE = 8


def _round_up(x, m):
    return (x + m - 1) // m * m


def _vmem_cap_bytes():
    """Generation-aware VMEM budget (~0.8x physical per-core VMEM)."""
    phys = None
    try:
        info = pltpu.get_tpu_info()
        phys = getattr(info, "vmem_capacity_bytes", None)
    except Exception:
        phys = None
    if not phys:
        phys = 64 << 20  # conservative: v7x per-TensorCore VMEM
    return max(int(phys * 0.8), 16 << 20)


def _spec(shape, index_map, buffers=None):
    """BlockSpec with optional pipeline buffering (guarded for API presence)."""
    if buffers is not None and hasattr(pl, "Buffered"):
        try:
            return pl.BlockSpec(shape, index_map,
                                pipeline_mode=pl.Buffered(buffers))
        except Exception:
            pass
    return pl.BlockSpec(shape, index_map)


def _linear_relu_bn(h_in, w, b, gamma, beta, inv_n, row_mask):
    """One hidden block: Linear -> ReLU -> BatchNorm1d (training batch stats).

    h_in/w are compute dtype (bf16); all BN math in f32.  If row_mask is not
    None the batch has padded rows and statistics are restricted to real rows.
    """
    h = jnp.dot(h_in, w, preferred_element_type=jnp.float32) + b
    h = jnp.maximum(h, 0.0)
    if row_mask is not None:
        h = h * row_mask
    mean = jnp.sum(h, axis=0, keepdims=True) * inv_n
    c = h - mean                                   # centered (no E[x^2]-E[x]^2)
    cm = c if row_mask is None else c * row_mask
    var = jnp.sum(cm * cm, axis=0, keepdims=True) * inv_n   # biased variance
    scale = gamma * jax.lax.rsqrt(var + BN_EPS)              # EUP rsqrt
    return c * scale + beta


def _row_mask(batch_pad, real_batch):
    if batch_pad == real_batch:
        return None
    rows = jax.lax.broadcasted_iota(jnp.int32, (batch_pad, 1), 0)
    return (rows < real_batch).astype(jnp.float32)


# --------------------------------------------------------------------------
# Fused path: everything VMEM-resident, no grid.
# --------------------------------------------------------------------------
def _fnet_fused_kernel(x_ref, wf_ref, bf_ref, wh_ref, bvec_ref, wl_ref, bl_ref,
                       out_ref, *, layer_count, real_batch, compute_dtype):
    batch_pad = x_ref.shape[0]
    mask = _row_mask(batch_pad, real_batch)
    inv_n = 1.0 / real_batch

    h = jnp.dot(x_ref[...].astype(compute_dtype), wf_ref[...],
                preferred_element_type=jnp.float32)
    h = jnp.maximum(h + bf_ref[...], 0.0)

    def body(l, h):
        w = wh_ref[l]                      # (W, W) bf16
        bvec = bvec_ref[l]                 # (3, W) f32: bias / gamma / beta
        return _linear_relu_bn(h.astype(compute_dtype), w,
                               bvec[0:1, :], bvec[1:2, :], bvec[2:3, :],
                               inv_n, mask)

    h = jax.lax.fori_loop(0, layer_count, body, h, unroll=True)

    out = jnp.dot(h.astype(compute_dtype), wl_ref[...],
                  preferred_element_type=jnp.float32) + bl_ref[...]
    out_ref[...] = out.astype(out_ref.dtype)


# --------------------------------------------------------------------------
# Streamed path: grid over layers, hidden weights DMA'd per step.
# --------------------------------------------------------------------------
def _fnet_streamed_kernel(x_ref, wf_ref, bf_ref, wh_ref, bvec_ref, wl_ref,
                          bl_ref, out_ref, h_ref, *, real_batch, compute_dtype):
    l = pl.program_id(0)
    n_layers = pl.num_programs(0)
    batch_pad = h_ref.shape[0]
    mask = _row_mask(batch_pad, real_batch)
    inv_n = 1.0 / real_batch

    # First Linear + ReLU, only on the first grid step.
    @pl.when(l == 0)
    def _():
        h0 = jnp.dot(x_ref[...].astype(compute_dtype), wf_ref[...],
                     preferred_element_type=jnp.float32)
        h0 = jnp.maximum(h0 + bf_ref[...], 0.0)
        h_ref[...] = h0.astype(h_ref.dtype)

    bvec = bvec_ref[0]                     # (3, W) f32 for this layer
    h = _linear_relu_bn(h_ref[...], wh_ref[0],
                        bvec[0:1, :], bvec[1:2, :], bvec[2:3, :],
                        inv_n, mask)
    h_ref[...] = h.astype(h_ref.dtype)     # bf16 activation carry

    # Last Linear, only on the final grid step.
    @pl.when(l == n_layers - 1)
    def _():
        out = jnp.dot(h.astype(compute_dtype), wl_ref[...],
                      preferred_element_type=jnp.float32) + bl_ref[...]
        out_ref[...] = out.astype(out_ref.dtype)


# --------------------------------------------------------------------------
# Wrapper
# --------------------------------------------------------------------------
def fnetwork_forward(x, params, *, layer_count, compute_dtype=jnp.bfloat16,
                     force_streamed=False):
    """params: dict with keys
         w_first (in, W), b_first (1, W)
         hidden : list of (w (W, W), b (1, W), gamma (1, W), beta (1, W))
         w_last (W, out), b_last (1, out)
    """
    assert layer_count >= 1, "FNetwork path here needs >= 1 hidden layer"
    batch, in_dim = x.shape
    W = params["w_first"].shape[1]
    out_dim = params["w_last"].shape[1]
    assert W % LANE == 0, "layer_width must be a multiple of 128"

    batch_pad = _round_up(batch, SUBLANE)
    in_pad = _round_up(in_dim, LANE)
    out_pad = _round_up(out_dim, LANE)

    # Lane/sublane-dense padding (zeros; BN stats are masked to real rows).
    x_p = jnp.pad(x.astype(jnp.float32),
                  ((0, batch_pad - batch), (0, in_pad - in_dim)))
    wf = jnp.pad(params["w_first"],
                 ((0, in_pad - in_dim), (0, 0))).astype(compute_dtype)
    bf = params["b_first"].astype(jnp.float32)
    wl = jnp.pad(params["w_last"],
                 ((0, 0), (0, out_pad - out_dim))).astype(compute_dtype)
    bl = jnp.pad(params["b_last"],
                 ((0, 0), (0, out_pad - out_dim))).astype(jnp.float32)

    # Stacked hidden weights and packed (bias, gamma, beta) per layer.
    wh = jnp.stack([w for (w, _, _, _) in params["hidden"]]).astype(compute_dtype)
    bvec = jnp.stack([jnp.concatenate([b, g, t], axis=0)
                      for (_, b, g, t) in params["hidden"]]).astype(jnp.float32)

    cb = jnp.dtype(compute_dtype).itemsize
    cap = _vmem_cap_bytes()

    fixed_bytes = (batch_pad * in_pad * 4 + in_pad * W * cb + W * 4
                   + W * out_pad * cb + out_pad * 4)
    hidden_bytes_all = layer_count * (W * W * cb + 3 * W * 4)
    out_bytes = batch_pad * out_pad * 4
    act_bytes = batch_pad * W * 4

    flops = 2 * batch_pad * (in_pad * W + layer_count * W * W + W * out_pad)
    bytes_accessed = (x_p.size * 4 + wf.size * cb + bf.size * 4
                      + wh.size * cb + bvec.size * 4
                      + wl.size * cb + bl.size * 4 + out_bytes)
    cost = pl.CostEstimate(flops=int(flops),
                           transcendentals=int(layer_count * W),
                           bytes_accessed=int(bytes_accessed))

    fused_bytes = (fixed_bytes + hidden_bytes_all + out_bytes
                   + 2 * act_bytes + (4 << 20))
    use_fused = (not force_streamed) and fused_bytes <= cap // 2

    if use_fused:
        kernel = functools.partial(_fnet_fused_kernel, layer_count=layer_count,
                                   real_batch=batch, compute_dtype=compute_dtype)
        out = pl.pallas_call(
            kernel,
            out_shape=jax.ShapeDtypeStruct((batch_pad, out_pad), jnp.float32),
            compiler_params=pltpu.CompilerParams(
                vmem_limit_bytes=int(min(max(fused_bytes, 16 << 20), cap))),
            cost_estimate=cost,
        )(x_p, wf, bf, wh, bvec, wl, bl)
        return out[:batch, :out_dim]

    # ---- streamed (layer-grid) path --------------------------------------
    def stream_bytes(buf_w):
        return (fixed_bytes                       # single-buffered fixed blocks
                + buf_w * W * W * cb              # hidden weight stream
                + 2 * 3 * W * 4                   # packed bias/gamma/beta
                + 2 * out_bytes                   # output block
                + batch_pad * W * cb              # bf16 activation scratch
                + (8 << 20))                      # headroom

    buf_w = 3 if stream_bytes(3) <= cap else 2
    vmem_limit = int(min(max(stream_bytes(buf_w), 16 << 20), cap))

    fixed2 = lambda l: (0, 0)
    per3 = lambda l: (l, 0, 0)

    in_specs = [
        _spec((batch_pad, in_pad), fixed2, buffers=1),   # x          (constant)
        _spec((in_pad, W), fixed2, buffers=1),           # w_first    (constant)
        _spec((1, W), fixed2, buffers=1),                # b_first    (constant)
        _spec((1, W, W), per3, buffers=buf_w),           # hidden w   (streamed)
        _spec((1, 3, W), per3),                          # bias/gamma/beta
        _spec((W, out_pad), fixed2, buffers=1),          # w_last     (constant)
        _spec((1, out_pad), fixed2, buffers=1),          # b_last     (constant)
    ]
    out_spec = pl.BlockSpec((batch_pad, out_pad), fixed2)

    kernel = functools.partial(_fnet_streamed_kernel, real_batch=batch,
                               compute_dtype=compute_dtype)
    out = pl.pallas_call(
        kernel,
        out_shape=jax.ShapeDtypeStruct((batch_pad, out_pad), jnp.float32),
        grid_spec=pltpu.PrefetchScalarGridSpec(
            num_scalar_prefetch=0,
            grid=(layer_count,),
            in_specs=in_specs,
            out_specs=out_spec,
            scratch_shapes=[pltpu.VMEM((batch_pad, W), compute_dtype)],
        ),
        compiler_params=pltpu.CompilerParams(
            dimension_semantics=("arbitrary",),
            vmem_limit_bytes=vmem_limit,
        ),
        cost_estimate=cost,
    )(x_p, wf, bf, wh, bvec, wl, bl)

    return out[:batch, :out_dim]


# --------------------------------------------------------------------------
# Parameter init (nn.Linear + orthogonal_ weights, BatchNorm1d defaults)
# --------------------------------------------------------------------------
def _orthogonal(key, out_dim, in_dim):
    """Mimics nn.init.orthogonal_ on a (out_dim, in_dim) weight."""
    a = jax.random.normal(key, (max(out_dim, in_dim), min(out_dim, in_dim)),
                          dtype=jnp.float32)
    q, r = jnp.linalg.qr(a)
    q = q * jnp.sign(jnp.diagonal(r))[None, :]
    if out_dim < in_dim:
        q = q.T
    return q[:out_dim, :in_dim]


def init_fnetwork_params(key, input_dim, output_dim, layer_count, layer_width):
    keys = jax.random.split(key, 2 * (layer_count + 2))
    k_iter = iter(keys)

    def make_linear(in_dim, out_dim):
        w = _orthogonal(next(k_iter), out_dim, in_dim)           # (out, in)
        bound = 1.0 / jnp.sqrt(jnp.float32(in_dim))
        b = jax.random.uniform(next(k_iter), (1, out_dim),
                               minval=-bound, maxval=bound, dtype=jnp.float32)
        return w.T.astype(jnp.float32), b                        # pass (in, out)

    params = {}
    params["w_first"], params["b_first"] = make_linear(input_dim, layer_width)
    hidden = []
    for _ in range(layer_count):
        w, b = make_linear(layer_width, layer_width)
        gamma = jnp.ones((1, layer_width), jnp.float32)   # BatchNorm1d weight
        beta = jnp.zeros((1, layer_width), jnp.float32)   # BatchNorm1d bias
        hidden.append((w, b, gamma, beta))
    params["hidden"] = hidden
    params["w_last"], params["b_last"] = make_linear(layer_width, output_dim)
    return params


def reference_forward(x, params, compute_dtype=jnp.bfloat16):
    """Pure-JAX reference mirroring the kernel's bf16-matmul / f32-BN math."""
    def mm(a, w):
        return jnp.dot(a.astype(compute_dtype), w.astype(compute_dtype),
                       preferred_element_type=jnp.float32)

    h = jnp.maximum(mm(x, params["w_first"]) + params["b_first"], 0.0)
    for (w, b, g, bt) in params["hidden"]:
        h = jnp.maximum(mm(h, w) + b, 0.0)
        mean = jnp.mean(h, axis=0, keepdims=True)
        var = jnp.mean((h - mean) ** 2, axis=0, keepdims=True)
        h = (h - mean) / jnp.sqrt(var + BN_EPS) * g + bt
    return mm(h, params["w_last"]) + params["b_last"]


if __name__ == "__main__":
    # Shapes consistent with FNetwork(input_dim=64, output_dim=16,
    # layer_count=2, layer_width=128) applied to a (batch, input_dim) batch.
    batch, input_dim, output_dim = 8, 64, 16
    layer_count, layer_width = 2, 128

    key = jax.random.PRNGKey(0)
    k_x, k_p = jax.random.split(key)
    x = jax.random.normal(k_x, (batch, input_dim), dtype=jnp.float32)
    params = init_fnetwork_params(k_p, input_dim, output_dim,
                                  layer_count, layer_width)

    ref = reference_forward(x, params)

    # 1) Fused, fully VMEM-resident path (auto-selected at this size).
    fwd = jax.jit(functools.partial(fnetwork_forward, layer_count=layer_count))
    out = jax.block_until_ready(fwd(x, params))
    assert out.shape == (batch, output_dim)
    assert jnp.allclose(out, ref, atol=2e-3, rtol=2e-3), (
        float(jnp.max(jnp.abs(out - ref))))

    # 2) Layer-streamed grid path (what large nets use), forced for validation.
    fwd_s = jax.jit(functools.partial(fnetwork_forward,
                                      layer_count=layer_count,
                                      force_streamed=True))
    out_s = jax.block_until_ready(fwd_s(x, params))
    assert jnp.allclose(out_s, ref, atol=2e-3, rtol=2e-3), (
        float(jnp.max(jnp.abs(out_s - ref))))

    # 3) Unaligned batch exercises the masked-BN / padded-batch path.
    x5 = x[:5]
    ref5 = reference_forward(x5, params)
    out5 = jax.block_until_ready(fwd(x5, params))
    assert out5.shape == (5, output_dim)
    assert jnp.allclose(out5, ref5, atol=2e-3, rtol=2e-3), (
        float(jnp.max(jnp.abs(out5 - ref5))))

    print("KERNEL_OK")
</pallas_src>

<mosaic_0001>
module attributes {stable_mosaic.version = 11 : i64} {
  func.func @_fnet_fused_kernel(%arg0: memref<8x128xf32, #tpu.memory_space<vmem>>, %arg1: memref<128x128xbf16, #tpu.memory_space<vmem>>, %arg2: memref<1x128xf32, #tpu.memory_space<vmem>>, %arg3: memref<2x128x128xbf16, #tpu.memory_space<vmem>>, %arg4: memref<2x3x128xf32, #tpu.memory_space<vmem>>, %arg5: memref<128x128xbf16, #tpu.memory_space<vmem>>, %arg6: memref<1x128xf32, #tpu.memory_space<vmem>>, %arg7: memref<8x128xf32, #tpu.memory_space<vmem>>) attributes {dimension_semantics = [], scalar_prefetch = 0 : i64, scratch_operands = 0 : i64, tpu.core_type = #tpu.core_type<tc>} {
    %c0 = arith.constant 0 : index
    %c0_0 = arith.constant 0 : index
    %0 = vector.load %arg0[%c0, %c0_0] : memref<8x128xf32, #tpu.memory_space<vmem>>, vector<8x128xf32>
    %1 = arith.truncf %0 : vector<8x128xf32> to vector<8x128xbf16>
    %c0_1 = arith.constant 0 : index
    %c0_2 = arith.constant 0 : index
    %2 = vector.load %arg1[%c0_1, %c0_2] : memref<128x128xbf16, #tpu.memory_space<vmem>>, vector<128x128xbf16>
    %cst = arith.constant dense<0.000000e+00> : vector<8x128xf32>
    %3 = tpu.matmul %1, %2, %cst {dimension_numbers = #tpu.dot_dimension_numbers<[1], [0], [0], [1], [0, 0, 1, 1], [], []>} : vector<8x128xbf16>, vector<128x128xbf16>, vector<8x128xf32> -> vector<8x128xf32>
    %c0_3 = arith.constant 0 : index
    %c0_4 = arith.constant 0 : index
    %4 = vector.load %arg2[%c0_3, %c0_4] : memref<1x128xf32, #tpu.memory_space<vmem>>, vector<1x128xf32>
    %5 = vector.broadcast %4 : vector<1x128xf32> to vector<8x128xf32>
    %6 = arith.addf %3, %5 : vector<8x128xf32>
    %cst_5 = arith.constant 0.000000e+00 : f32
    %7 = vector.broadcast %cst_5 : f32 to vector<8x128xf32>
    %8 = arith.maximumf %6, %7 : vector<8x128xf32>
    %c0_i32 = arith.constant 0 : i32
    %9 = arith.index_cast %c0_i32 : i32 to index
    %c0_6 = arith.constant 0 : index
    %c0_7 = arith.constant 0 : index
    %10 = vector.load %arg3[%9, %c0_6, %c0_7] : memref<2x128x128xbf16, #tpu.memory_space<vmem>>, vector<1x128x128xbf16>
    %11 = vector.shape_cast %10 : vector<1x128x128xbf16> to vector<128x128xbf16>
    %12 = arith.index_cast %c0_i32 : i32 to index
    %c0_8 = arith.constant 0 : index
    %c0_9 = arith.constant 0 : index
    %13 = vector.load %arg4[%12, %c0_8, %c0_9] : memref<2x3x128xf32, #tpu.memory_space<vmem>>, vector<1x3x128xf32>
    %14 = vector.shape_cast %13 : vector<1x3x128xf32> to vector<3x128xf32>
    %15 = arith.truncf %8 : vector<8x128xf32> to vector<8x128xbf16>
    %16 = vector.extract_strided_slice %14 {offsets = [0, 0], sizes = [1, 128], strides = [1, 1]} : vector<3x128xf32> to vector<1x128xf32>
    %17 = vector.extract_strided_slice %14 {offsets = [1, 0], sizes = [1, 128], strides = [1, 1]} : vector<3x128xf32> to vector<1x128xf32>
    %18 = vector.extract_strided_slice %14 {offsets = [2, 0], sizes = [1, 128], strides = [1, 1]} : vector<3x128xf32> to vector<1x128xf32>
    %cst_10 = arith.constant dense<0.000000e+00> : vector<8x128xf32>
    %19 = tpu.matmul %15, %11, %cst_10 {dimension_numbers = #tpu.dot_dimension_numbers<[1], [0], [0], [1], [0, 0, 1, 1], [], []>} : vector<8x128xbf16>, vector<128x128xbf16>, vector<8x128xf32> -> vector<8x128xf32>
    %20 = vector.broadcast %16 : vector<1x128xf32> to vector<8x128xf32>
    %21 = arith.addf %19, %20 : vector<8x128xf32>
    %cst_11 = arith.constant 0.000000e+00 : f32
    %22 = vector.broadcast %cst_11 : f32 to vector<8x128xf32>
    %23 = arith.maximumf %21, %22 : vector<8x128xf32>
    %cst_12 = arith.constant dense<0.000000e+00> : vector<128xf32>
    %24 = vector.multi_reduction <add>, %23, %cst_12 [0] : vector<8x128xf32> to vector<128xf32>
    %25 = vector.shape_cast %24 : vector<128xf32> to vector<1x128xf32>
    %cst_13 = arith.constant 1.250000e-01 : f32
    %26 = vector.broadcast %cst_13 : f32 to vector<1x128xf32>
    %27 = arith.mulf %25, %26 : vector<1x128xf32>
    %28 = vector.broadcast %27 : vector<1x128xf32> to vector<8x128xf32>
    %29 = arith.subf %23, %28 : vector<8x128xf32>
    %30 = arith.mulf %29, %29 : vector<8x128xf32>
    %cst_14 = arith.constant dense<0.000000e+00> : vector<128xf32>
    %31 = vector.multi_reduction <add>, %30, %cst_14 [0] : vector<8x128xf32> to vector<128xf32>
    %32 = vector.shape_cast %31 : vector<128xf32> to vector<1x128xf32>
    %cst_15 = arith.constant 1.250000e-01 : f32
    %33 = vector.broadcast %cst_15 : f32 to vector<1x128xf32>
    %34 = arith.mulf %32, %33 : vector<1x128xf32>
    %cst_16 = arith.constant 9.99999974E-6 : f32
    %35 = vector.broadcast %cst_16 : f32 to vector<1x128xf32>
    %36 = arith.addf %34, %35 : vector<1x128xf32>
    %37 = math.rsqrt %36 : vector<1x128xf32>
    %38 = arith.mulf %17, %37 : vector<1x128xf32>
    %39 = vector.broadcast %38 : vector<1x128xf32> to vector<8x128xf32>
    %40 = arith.mulf %29, %39 : vector<8x128xf32>
    %41 = vector.broadcast %18 : vector<1x128xf32> to vector<8x128xf32>
    %42 = arith.addf %40, %41 : vector<8x128xf32>
    %c1_i32 = arith.constant 1 : i32
    %43 = arith.index_cast %c1_i32 : i32 to index
    %c0_17 = arith.constant 0 : index
    %c0_18 = arith.constant 0 : index
    %44 = vector.load %arg3[%43, %c0_17, %c0_18] : memref<2x128x128xbf16, #tpu.memory_space<vmem>>, vector<1x128x128xbf16>
    %45 = vector.shape_cast %44 : vector<1x128x128xbf16> to vector<128x128xbf16>
    %46 = arith.index_cast %c1_i32 : i32 to index
    %c0_19 = arith.constant 0 : index
    %c0_20 = arith.constant 0 : index
    %47 = vector.load %arg4[%46, %c0_19, %c0_20] : memref<2x3x128xf32, #tpu.memory_space<vmem>>, vector<1x3x128xf32>
    %48 = vector.shape_cast %47 : vector<1x3x128xf32> to vector<3x128xf32>
    %49 = arith.truncf %42 : vector<8x128xf32> to vector<8x128xbf16>
    %50 = vector.extract_strided_slice %48 {offsets = [0, 0], sizes = [1, 128], strides = [1, 1]} : vector<3x128xf32> to vector<1x128xf32>
    %51 = vector.extract_strided_slice %48 {offsets = [1, 0], sizes = [1, 128], strides = [1, 1]} : vector<3x128xf32> to vector<1x128xf32>
    %52 = vector.extract_strided_slice %48 {offsets = [2, 0], sizes = [1, 128], strides = [1, 1]} : vector<3x128xf32> to vector<1x128xf32>
    %cst_21 = arith.constant dense<0.000000e+00> : vector<8x128xf32>
    %53 = tpu.matmul %49, %45, %cst_21 {dimension_numbers = #tpu.dot_dimension_numbers<[1], [0], [0], [1], [0, 0, 1, 1], [], []>} : vector<8x128xbf16>, vector<128x128xbf16>, vector<8x128xf32> -> vector<8x128xf32>
    %54 = vector.broadcast %50 : vector<1x128xf32> to vector<8x128xf32>
    %55 = arith.addf %53, %54 : vector<8x128xf32>
    %cst_22 = arith.constant 0.000000e+00 : f32
    %56 = vector.broadcast %cst_22 : f32 to vector<8x128xf32>
    %57 = arith.maximumf %55, %56 : vector<8x128xf32>
    %cst_23 = arith.constant dense<0.000000e+00> : vector<128xf32>
    %58 = vector.multi_reduction <add>, %57, %cst_23 [0] : vector<8x128xf32> to vector<128xf32>
    %59 = vector.shape_cast %58 : vector<128xf32> to vector<1x128xf32>
    %cst_24 = arith.constant 1.250000e-01 : f32
    %60 = vector.broadcast %cst_24 : f32 to vector<1x128xf32>
    %61 = arith.mulf %59, %60 : vector<1x128xf32>
    %62 = vector.broadcast %61 : vector<1x128xf32> to vector<8x128xf32>
    %63 = arith.subf %57, %62 : vector<8x128xf32>
    %64 = arith.mulf %63, %63 : vector<8x128xf32>
    %cst_25 = arith.constant dense<0.000000e+00> : vector<128xf32>
    %65 = vector.multi_reduction <add>, %64, %cst_25 [0] : vector<8x128xf32> to vector<128xf32>
    %66 = vector.shape_cast %65 : vector<128xf32> to vector<1x128xf32>
    %cst_26 = arith.constant 1.250000e-01 : f32
    %67 = vector.broadcast %cst_26 : f32 to vector<1x128xf32>
    %68 = arith.mulf %66, %67 : vector<1x128xf32>
    %cst_27 = arith.constant 9.99999974E-6 : f32
    %69 = vector.broadcast %cst_27 : f32 to vector<1x128xf32>
    %70 = arith.addf %68, %69 : vector<1x128xf32>
    %71 = math.rsqrt %70 : vector<1x128xf32>
    %72 = arith.mulf %51, %71 : vector<1x128xf32>
    %73 = vector.broadcast %72 : vector<1x128xf32> to vector<8x128xf32>
    %74 = arith.mulf %63, %73 : vector<8x128xf32>
    %75 = vector.broadcast %52 : vector<1x128xf32> to vector<8x128xf32>
    %76 = arith.addf %74, %75 : vector<8x128xf32>
    %c2_i32 = arith.constant 2 : i32
    %77 = arith.truncf %76 : vector<8x128xf32> to vector<8x128xbf16>
    %c0_28 = arith.constant 0 : index
    %c0_29 = arith.constant 0 : index
    %78 = vector.load %arg5[%c0_28, %c0_29] : memref<128x128xbf16, #tpu.memory_space<vmem>>, vector<128x128xbf16>
    %cst_30 = arith.constant dense<0.000000e+00> : vector<8x128xf32>
    %79 = tpu.matmul %77, %78, %cst_30 {dimension_numbers = #tpu.dot_dimension_numbers<[1], [0], [0], [1], [0, 0, 1, 1], [], []>} : vector<8x128xbf16>, vector<128x128xbf16>, vector<8x128xf32> -> vector<8x128xf32>
    %c0_31 = arith.constant 0 : index
    %c0_32 = arith.constant 0 : index
    %80 = vector.load %arg6[%c0_31, %c0_32] : memref<1x128xf32, #tpu.memory_space<vmem>>, vector<1x128xf32>
    %81 = vector.broadcast %80 : vector<1x128xf32> to vector<8x128xf32>
    %82 = arith.addf %79, %81 : vector<8x128xf32>
    %c0_33 = arith.constant 0 : index
    %c0_34 = arith.constant 0 : index
    %83 = vector.load %arg7[%c0_33, %c0_34] : memref<8x128xf32, #tpu.memory_space<vmem>>, vector<8x128xf32>
    tpu.vector_store %arg7[%c0_33, %c0_34], %82 {strides = array<i32>} : memref<8x128xf32, #tpu.memory_space<vmem>>, vector<8x128xf32>,
    return
  }
}

</mosaic_0001>

<llo_original>
// kernel: fnetwork_forward.1
$region0: #{fnetwork_forward.1}
  #allocation0 [shape = 'u32[]', space=smem, size = 0x4, offset = 0x4, fixed_abs, tag = 'smem constant byte address 0x4 - core index']
  #allocation1 [shape = 'u32[144,128]{1,0:T(1,128)}', space=vmem, size = 0x12000, scoped, tag = 'internal scratch']
  %s0 = inlined_call_operand.vmem [shape: f32[8,128], index: 0, kind: input, shape index: {}]
  %s1 = inlined_call_operand.vmem [shape: bf16[128,128], index: 1, kind: input, shape index: {}]
  %s2 = inlined_call_operand.vmem [shape: f32[1,128], index: 2, kind: input, shape index: {}]
  %s3 = inlined_call_operand.vmem [shape: bf16[2,128,128], index: 3, kind: input, shape index: {}]
  %s4 = inlined_call_operand.vmem [shape: f32[2,3,128], index: 4, kind: input, shape index: {}]
  %s5 = inlined_call_operand.vmem [shape: bf16[128,128], index: 5, kind: input, shape index: {}]
  %s6 = inlined_call_operand.vmem [shape: f32[1,128], index: 6, kind: input, shape index: {}]
  %s7 = inlined_call_operand.hbm [shape: f32[8,128], index: 7, kind: output, shape index: {}]
  %s8 = sld [smem:[#allocation0]]
  $region38: #{fnetwork_forward.1} parent=0
    _
  %s10 = ssub.s32 1, %s8
  %s11 = scalar_select 0, %s10, %s8
  $region1: #{fnetwork_forward.1} parent=0
    #allocation2 [shape = 'u8[4096]{0}', space=vmem, size = 0x1000, scoped, tag = 'output window, operand 0, single buffered']
    #allocation3 [shape = 's32[1]{0}', space=sflag, size = 0x4, scoped, tag = 'scoped memory for fnetwork_forward.1']
    %12 = vsyncpa [#allocation3], 0
    // Predicated region
    $region2: #{fnetwork_forward.1} parent=1 // pred_check
      _
    $region3: #{fnetwork_forward.1} parent=1 // pred_check_branch
      %14 = sbr.rel (0) target = $region5
    $region4: #{fnetwork_forward.1} parent=1 // pred_region
      _
    $region5: #{fnetwork_forward.1} parent=1 // pred_fallthru
      _
    // Predicated region
    $region6: #{fnetwork_forward.1} parent=1 // pred_check
      _
    $region7: #{fnetwork_forward.1} parent=1 // pred_check_branch
      %16 = sbr.rel (0) target = $region9
    $region8: #{fnetwork_forward.1} parent=1 // pred_region
      _
    $region9: #{fnetwork_forward.1} parent=1 // pred_fallthru
      _
    // Predicated region
    $region10: #{fnetwork_forward.1} parent=1 // pred_check
      _
    $region11: #{fnetwork_forward.1} parent=1 // pred_check_branch
      %18 = sbr.rel (0) target = $region13
    $region12: #{fnetwork_forward.1} parent=1 // pred_region
      _
    $region13: #{fnetwork_forward.1} parent=1 // pred_fallthru
      _
    // Predicated region
    $region14: #{fnetwork_forward.1} parent=1 // pred_check
      _
    $region15: #{fnetwork_forward.1} parent=1 // pred_check_branch
      %20 = sbr.rel (0) target = $region17
    $region16: #{fnetwork_forward.1} parent=1 // pred_region
      _
    $region17: #{fnetwork_forward.1} parent=1 // pred_fallthru
      _
    // Predicated region
    $region18: #{fnetwork_forward.1} parent=1 // pred_check
      _
    $region19: #{fnetwork_forward.1} parent=1 // pred_check_branch
      %22 = sbr.rel (0) target = $region21
    $region20: #{fnetwork_forward.1} parent=1 // pred_region
      _
    $region21: #{fnetwork_forward.1} parent=1 // pred_fallthru
      _
    // Predicated region
    $region22: #{fnetwork_forward.1} parent=1 // pred_check
      _
    $region23: #{fnetwork_forward.1} parent=1 // pred_check_branch
      %24 = sbr.rel (0) target = $region25
    $region24: #{fnetwork_forward.1} parent=1 // pred_region
      _
    $region25: #{fnetwork_forward.1} parent=1 // pred_fallthru
      _
    // Predicated region
    $region26: #{fnetwork_forward.1} parent=1 // pred_check
      _
    $region27: #{fnetwork_forward.1} parent=1 // pred_check_branch
      %26 = sbr.rel (0) target = $region29
    $region28: #{fnetwork_forward.1} parent=1 // pred_region
      _
    $region29: #{fnetwork_forward.1} parent=1 // pred_fallthru
      _
    %v28 = vld [vmem:[%s0] sm:$0xff]
    %v29 = vpack.c.bf16 %v28, %v28
    %v30 = vld [vmem:[%s1] sm:$0xf]
    %v31 = vld [vmem:[%s1 + $0x4] sm:$0xf]
    %v32 = vld [vmem:[%s1 + $0x8] sm:$0xf]
    %v33 = vld [vmem:[%s1 + $0xc] sm:$0xf]
    %v34 = vld [vmem:[%s1 + $0x10] sm:$0xf]
    %v35 = vld [vmem:[%s1 + $0x14] sm:$0xf]
    %v36 = vld [vmem:[%s1 + $0x18] sm:$0xf]
    %v37 = vld [vmem:[%s1 + $0x1c] sm:$0xf]
    %v38 = vld [vmem:[%s1 + $0x20] sm:$0xf]
    %v39 = vld [vmem:[%s1 + $0x24] sm:$0xf]
    %v40 = vld [vmem:[%s1 + $0x28] sm:$0xf]
    %v41 = vld [vmem:[%s1 + $0x2c] sm:$0xf]
    %v42 = vld [vmem:[%s1 + $0x30] sm:$0xf]
    %v43 = vld [vmem:[%s1 + $0x34] sm:$0xf]
    %v44 = vld [vmem:[%s1 + $0x38] sm:$0xf]
    %v45 = vld [vmem:[%s1 + $0x3c] sm:$0xf]
    %v46 = vld [vmem:[%s2] sm:$0x1]
    %v48 = vlaneseq
    %v49 = vshrl.u32 %v48, 7
    %v50 = vsub.s32 0, %v49
    %v51 = vrot.slane %v46, %v50
    %v69 = vunpack.c.l.b16 %v30
    %v70 = vunpack.c.l.b16 %v31
    %v71 = vunpack.c.l.b16 %v32
    %v72 = vunpack.c.l.b16 %v33
    %v73 = vunpack.c.l.b16 %v34
    %v74 = vunpack.c.l.b16 %v35
    %v75 = vunpack.c.l.b16 %v36
    %v76 = vunpack.c.l.b16 %v37
    %v77 = vunpack.c.l.b16 %v38
    %v78 = vunpack.c.l.b16 %v39
    %v79 = vunpack.c.l.b16 %v40
    %v80 = vunpack.c.l.b16 %v41
    %v81 = vunpack.c.l.b16 %v42
    %v82 = vunpack.c.l.b16 %v43
    %v83 = vunpack.c.l.b16 %v44
    %v84 = vunpack.c.l.b16 %v45
    %v85 = vpack.c.b16 %v70, %v69
    %v86 = vpack.c.b16 %v72, %v71
    %v87 = vpack.c.b16 %v74, %v73
    %v88 = vpack.c.b16 %v76, %v75
    %v89 = vpack.c.b16 %v78, %v77
    %v90 = vpack.c.b16 %v80, %v79
    %v91 = vpack.c.b16 %v82, %v81
    %v92 = vpack.c.b16 %v84, %v83
    %101 = vmatprep.subr.bf16.mxu0 0
    %102 = vmatpush1.bf16.msra.mxu0 %v85
    %103 = vmatprep.subr.bf16.mxu0 0
    %104 = vmatpush1.bf16.msra.mxu0 %v86
    %105 = vmatprep.subr.bf16.mxu0 0
    %106 = vmatpush1.bf16.msra.mxu0 %v87
    %107 = vmatprep.subr.bf16.mxu0 0
    %108 = vmatpush1.bf16.msra.mxu0 %v88
    %109 = vmatprep.subr.bf16.mxu0 0
    %110 = vmatpush1.bf16.msra.mxu0 %v89
    %111 = vmatprep.subr.bf16.mxu0 0
    %112 = vmatpush1.bf16.msra.mxu0 %v90
    %113 = vmatprep.subr.bf16.mxu0 0
    %114 = vmatpush1.bf16.msra.mxu0 %v91
    %115 = vmatprep.subr.bf16.mxu0 0
    %116 = vmatpush1.bf16.msra.mxu0 %v92
    %117 = vmatprep.subr.bf16.mxu0 0
    %118 = vmatpush1.bf16.msra.mxu0 0
    %119 = vmatprep.subr.bf16.mxu0 0
    %120 = vmatpush1.bf16.msra.mxu0 0
    %121 = vmatprep.subr.bf16.mxu0 0
    %122 = vmatpush1.bf16.msra.mxu0 0
    %123 = vmatprep.subr.bf16.mxu0 0
    %124 = vmatpush1.bf16.msra.mxu0 0
    %125 = vmatprep.subr.bf16.mxu0 0
    %126 = vmatpush1.bf16.msra.mxu0 0
    %127 = vmatprep.subr.bf16.mxu0 0
    %128 = vmatpush1.bf16.msra.mxu0 0
    %129 = vmatprep.subr.bf16.mxu0 0
    %130 = vmatpush1.bf16.msra.mxu0 0
    %131 = vmatprep.subr.bf16.mxu0 0
    %132 = vmatpush1.bf16.msra.mxu0 0
    %133 = vmatprep.mubr.bf16.mxu0 0
    %134 = vmatmul.mubr.bf16.gmra.mrb[0].mxu0 %v29
    %v135 = vpop.f32.mrb[0].mxu0
    %v136 = vadd.f32 %v51, %v135
    %v137 = vpop.f32.mrb[0].mxu0
    %v138 = vpop.f32.mrb[0].mxu0
    %v139 = vpop.f32.mrb[0].mxu0
    %140 = vdwg.mxu0
    %v141 = vmax.f32 %v136, 0.0
    %v142 = vld [vmem:[%s3] sm:$0xf]
    %v143 = vld [vmem:[%s3 + $0x4] sm:$0xf]
    %v144 = vld [vmem:[%s3 + $0x8] sm:$0xf]
    %v145 = vld [vmem:[%s3 + $0xc] sm:$0xf]
    %v146 = vld [vmem:[%s3 + $0x10] sm:$0xf]
    %v147 = vld [vmem:[%s3 + $0x14] sm:$0xf]
    %v148 = vld [vmem:[%s3 + $0x18] sm:$0xf]
    %v149 = vld [vmem:[%s3 + $0x1c] sm:$0xf]
    %v150 = vld [vmem:[%s3 + $0x20] sm:$0xf]
    %v151 = vld [vmem:[%s3 + $0x24] sm:$0xf]
    %v152 = vld [vmem:[%s3 + $0x28] sm:$0xf]
    %v153 = vld [vmem:[%s3 + $0x2c] sm:$0xf]
    %v154 = vld [vmem:[%s3 + $0x30] sm:$0xf]
    %v155 = vld [vmem:[%s3 + $0x34] sm:$0xf]
    %v156 = vld [vmem:[%s3 + $0x38] sm:$0xf]
    %v157 = vld [vmem:[%s3 + $0x3c] sm:$0xf]
    %v158 = vld [vmem:[%s4] sm:$0x7]
    %v159 = vpack.c.bf16 %v141, %v141
    %v160 = vlaneseq
    %v161 = vshrl.u32 %v160, 7
    %v162 = vsub.s32 0, %v161
    %v163 = vrot.slane %v158, %v162
    %v180 = vunpack.c.l.b16 %v142
    %v181 = vunpack.c.l.b16 %v143
    %v182 = vunpack.c.l.b16 %v144
    %v183 = vunpack.c.l.b16 %v145
    %v184 = vunpack.c.l.b16 %v146
    %v185 = vunpack.c.l.b16 %v147
    %v186 = vunpack.c.l.b16 %v148
    %v187 = vunpack.c.l.b16 %v149
    %v188 = vunpack.c.l.b16 %v150
    %v189 = vunpack.c.l.b16 %v151
    %v190 = vunpack.c.l.b16 %v152
    %v191 = vunpack.c.l.b16 %v153
    %v192 = vunpack.c.l.b16 %v154
    %v193 = vunpack.c.l.b16 %v155
    %v194 = vunpack.c.l.b16 %v156
    %v195 = vunpack.c.l.b16 %v157
    %v196 = vpack.c.b16 %v181, %v180
    %v197 = vpack.c.b16 %v183, %v182
    %v198 = vpack.c.b16 %v185, %v184
    %v199 = vpack.c.b16 %v187, %v186
    %v200 = vpack.c.b16 %v189, %v188
    %v201 = vpack.c.b16 %v191, %v190
    %v202 = vpack.c.b16 %v193, %v192
    %v203 = vpack.c.b16 %v195, %v194
    %212 = vmatprep.subr.bf16.mxu0 0
    %213 = vmatpush1.bf16.msra.mxu0 %v196
    %214 = vmatprep.subr.bf16.mxu0 0
    %215 = vmatpush1.bf16.msra.mxu0 %v197
    %216 = vmatprep.subr.bf16.mxu0 0
    %217 = vmatpush1.bf16.msra.mxu0 %v198
    %218 = vmatprep.subr.bf16.mxu0 0
    %219 = vmatpush1.bf16.msra.mxu0 %v199
    %220 = vmatprep.subr.bf16.mxu0 0
    %221 = vmatpush1.bf16.msra.mxu0 %v200
    %222 = vmatprep.subr.bf16.mxu0 0
    %223 = vmatpush1.bf16.msra.mxu0 %v201
    %224 = vmatprep.subr.bf16.mxu0 0
    %225 = vmatpush1.bf16.msra.mxu0 %v202
    %226 = vmatprep.subr.bf16.mxu0 0
    %227 = vmatpush1.bf16.msra.mxu0 %v203
    %228 = vmatprep.subr.bf16.mxu0 0
    %229 = vmatpush1.bf16.msra.mxu0 0
    %230 = vmatprep.subr.bf16.mxu0 0
    %231 = vmatpush1.bf16.msra.mxu0 0
    %232 = vmatprep.subr.bf16.mxu0 0
    %233 = vmatpush1.bf16.msra.mxu0 0
    %234 = vmatprep.subr.bf16.mxu0 0
    %235 = vmatpush1.bf16.msra.mxu0 0
    %236 = vmatprep.subr.bf16.mxu0 0
    %237 = vmatpush1.bf16.msra.mxu0 0
    %238 = vmatprep.subr.bf16.mxu0 0
    %239 = vmatpush1.bf16.msra.mxu0 0
    %240 = vmatprep.subr.bf16.mxu0 0
    %241 = vmatpush1.bf16.msra.mxu0 0
    %242 = vmatprep.subr.bf16.mxu0 0
    %243 = vmatpush1.bf16.msra.mxu0 0
    %244 = vmatprep.mubr.bf16.mxu0 0
    %245 = vmatmul.mubr.bf16.gmra.mrb[0].mxu0 %v159
    %v246 = vpop.f32.mrb[0].mxu0
    %v247 = vadd.f32 %v163, %v246
    %v248 = vpop.f32.mrb[0].mxu0
    %v249 = vpop.f32.mrb[0].mxu0
    %v250 = vpop.f32.mrb[0].mxu0
    %251 = vdwg.mxu0
    %v252 = vmax.f32 %v247, 0.0
    %v253 = vrot.slane %v252, 4
    %v254 = vadd.f32 %v252, %v253
    %v255 = vrot.slane %v254, 2
    %v256 = vadd.f32 %v254, %v255
    %v257 = vrot.slane %v256, 1
    %v258 = vadd.f32 %v256, %v257
    %v259 = vmul.f32 %v258, 0.125
    %v260 = vsub.f32 %v252, %v259
    %v261 = vmul.f32 %v260, %v260
    %v262 = vrot.slane %v261, 4
    %v263 = vadd.f32 %v261, %v262
    %v264 = vrot.slane %v263, 2
    %v265 = vadd.f32 %v263, %v264
    %v266 = vrot.slane %v265, 1
    %v267 = vadd.f32 %v265, %v266
    %v268 = vmul.f32 %v267, 0.125
    %v269 = vadd.f32 %v268, 1e-05
    %v270 = vrsqrt.pop %v269
    %v271 = vmul.f32 %v158, %v270
    %v272 = vlaneseq
    %v273 = vshrl.u32 %v272, 7
    %v274 = vsub.s32 1, %v273
    %v275 = vrot.slane %v271, %v274
    %v276 = vmul.f32 %v260, %v275
    %v277 = vlaneseq
    %v278 = vshrl.u32 %v277, 7
    %v279 = vsub.s32 2, %v278
    %v280 = vrot.slane %v158, %v279
    %v281 = vadd.f32 %v276, %v280
    %s282 = scalar_lea.vmem %s3, 64
    %v283 = vld [vmem:[%s282] sm:$0xf]
    %v284 = vld [vmem:[%s282 + $0x4] sm:$0xf]
    %v285 = vld [vmem:[%s282 + $0x8] sm:$0xf]
    %v286 = vld [vmem:[%s282 + $0xc] sm:$0xf]
    %v287 = vld [vmem:[%s282 + $0x10] sm:$0xf]
    %v288 = vld [vmem:[%s282 + $0x14] sm:$0xf]
    %v289 = vld [vmem:[%s282 + $0x18] sm:$0xf]
    %v290 = vld [vmem:[%s282 + $0x1c] sm:$0xf]
    %v291 = vld [vmem:[%s282 + $0x20] sm:$0xf]
    %v292 = vld [vmem:[%s282 + $0x24] sm:$0xf]
    %v293 = vld [vmem:[%s282 + $0x28] sm:$0xf]
    %v294 = vld [vmem:[%s282 + $0x2c] sm:$0xf]
    %v295 = vld [vmem:[%s282 + $0x30] sm:$0xf]
    %v296 = vld [vmem:[%s282 + $0x34] sm:$0xf]
    %v297 = vld [vmem:[%s282 + $0x38] sm:$0xf]
    %v298 = vld [vmem:[%s282 + $0x3c] sm:$0xf]
    %s299 = scalar_lea.vmem %s4, 4
    %v300 = vld [vmem:[%s299] sm:$0x7]
    %v301 = vpack.c.bf16 %v281, %v281
    %v302 = vlaneseq
    %v303 = vshrl.u32 %v302, 7
    %v304 = vsub.s32 0, %v303
    %v305 = vrot.slane %v300, %v304
    %v322 = vunpack.c.l.b16 %v283
    %v323 = vunpack.c.l.b16 %v284
    %v324 = vunpack.c.l.b16 %v285
    %v325 = vunpack.c.l.b16 %v286
    %v326 = vunpack.c.l.b16 %v287
    %v327 = vunpack.c.l.b16 %v288
    %v328 = vunpack.c.l.b16 %v289
    %v329 = vunpack.c.l.b16 %v290
    %v330 = vunpack.c.l.b16 %v291
    %v331 = vunpack.c.l.b16 %v292
    %v332 = vunpack.c.l.b16 %v293
    %v333 = vunpack.c.l.b16 %v294
    %v334 = vunpack.c.l.b16 %v295
    %v335 = vunpack.c.l.b16 %v296
    %v336 = vunpack.c.l.b16 %v297
    %v337 = vunpack.c.l.b16 %v298
    %v338 = vpack.c.b16 %v323, %v322
    %v339 = vpack.c.b16 %v325, %v324
    %v340 = vpack.c.b16 %v327, %v326
    %v341 = vpack.c.b16 %v329, %v328
    %v342 = vpack.c.b16 %v331, %v330
    %v343 = vpack.c.b16 %v333, %v332
    %v344 = vpack.c.b16 %v335, %v334
    %v345 = vpack.c.b16 %v337, %v336
    %354 = vmatprep.subr.bf16.mxu0 0
    %355 = vmatpush1.bf16.msra.mxu0 %v338
    %356 = vmatprep.subr.bf16.mxu0 0
    %357 = vmatpush1.bf16.msra.mxu0 %v339
    %358 = vmatprep.subr.bf16.mxu0 0
    %359 = vmatpush1.bf16.msra.mxu0 %v340
    %360 = vmatprep.subr.bf16.mxu0 0
    %361 = vmatpush1.bf16.msra.mxu0 %v341
    %362 = vmatprep.subr.bf16.mxu0 0
    %363 = vmatpush1.bf16.msra.mxu0 %v342
    %364 = vmatprep.subr.bf16.mxu0 0
    %365 = vmatpush1.bf16.msra.mxu0 %v343
    %366 = vmatprep.subr.bf16.mxu0 0
    %367 = vmatpush1.bf16.msra.mxu0 %v344
    %368 = vmatprep.subr.bf16.mxu0 0
    %369 = vmatpush1.bf16.msra.mxu0 %v345
    %370 = vmatprep.subr.bf16.mxu0 0
    %371 = vmatpush1.bf16.msra.mxu0 0
    %372 = vmatprep.subr.bf16.mxu0 0
    %373 = vmatpush1.bf16.msra.mxu0 0
    %374 = vmatprep.subr.bf16.mxu0 0
    %375 = vmatpush1.bf16.msra.mxu0 0
    %376 = vmatprep.subr.bf16.mxu0 0
    %377 = vmatpush1.bf16.msra.mxu0 0
    %378 = vmatprep.subr.bf16.mxu0 0
    %379 = vmatpush1.bf16.msra.mxu0 0
    %380 = vmatprep.subr.bf16.mxu0 0
    %381 = vmatpush1.bf16.msra.mxu0 0
    %382 = vmatprep.subr.bf16.mxu0 0
    %383 = vmatpush1.bf16.msra.mxu0 0
    %384 = vmatprep.subr.bf16.mxu0 0
    %385 = vmatpush1.bf16.msra.mxu0 0
    %386 = vmatprep.mubr.bf16.mxu0 0
    %387 = vmatmul.mubr.bf16.gmra.mrb[0].mxu0 %v301
    %v388 = vpop.f32.mrb[0].mxu0
    %v389 = vadd.f32 %v305, %v388
    %v390 = vpop.f32.mrb[0].mxu0
    %v391 = vpop.f32.mrb[0].mxu0
    %v392 = vpop.f32.mrb[0].mxu0
    %393 = vdwg.mxu0
    %v394 = vmax.f32 %v389, 0.0
    %v395 = vrot.slane %v394, 4
    %v396 = vadd.f32 %v394, %v395
    %v397 = vrot.slane %v396, 2
    %v398 = vadd.f32 %v396, %v397
    %v399 = vrot.slane %v398, 1
    %v400 = vadd.f32 %v398, %v399
    %v401 = vmul.f32 %v400, 0.125
    %v402 = vsub.f32 %v394, %v401
    %v403 = vmul.f32 %v402, %v402
    %v404 = vrot.slane %v403, 4
    %v405 = vadd.f32 %v403, %v404
    %v406 = vrot.slane %v405, 2
    %v407 = vadd.f32 %v405, %v406
    %v408 = vrot.slane %v407, 1
    %v409 = vadd.f32 %v407, %v408
    %v410 = vmul.f32 %v409, 0.125
    %v411 = vadd.f32 %v410, 1e-05
    %v412 = vrsqrt.pop %v411
    %v413 = vmul.f32 %v300, %v412
    %v414 = vlaneseq
    %v415 = vshrl.u32 %v414, 7
    %v416 = vsub.s32 1, %v415
    %v417 = vrot.slane %v413, %v416
    %v418 = vmul.f32 %v402, %v417
    %v419 = vlaneseq
    %v420 = vshrl.u32 %v419, 7
    %v421 = vsub.s32 2, %v420
    %v422 = vrot.slane %v300, %v421
    %v423 = vadd.f32 %v418, %v422
    %v424 = vpack.c.bf16 %v423, %v423
    %v425 = vld [vmem:[%s5] sm:$0xf]
    %v426 = vld [vmem:[%s5 + $0x4] sm:$0xf]
    %v427 = vld [vmem:[%s5 + $0x8] sm:$0xf]
    %v428 = vld [vmem:[%s5 + $0xc] sm:$0xf]
    %v429 = vld [vmem:[%s5 + $0x10] sm:$0xf]
    %v430 = vld [vmem:[%s5 + $0x14] sm:$0xf]
    %v431 = vld [vmem:[%s5 + $0x18] sm:$0xf]
    %v432 = vld [vmem:[%s5 + $0x1c] sm:$0xf]
    %v433 = vld [vmem:[%s5 + $0x20] sm:$0xf]
    %v434 = vld [vmem:[%s5 + $0x24] sm:$0xf]
    %v435 = vld [vmem:[%s5 + $0x28] sm:$0xf]
    %v436 = vld [vmem:[%s5 + $0x2c] sm:$0xf]
    %v437 = vld [vmem:[%s5 + $0x30] sm:$0xf]
    %v438 = vld [vmem:[%s5 + $0x34] sm:$0xf]
    %v439 = vld [vmem:[%s5 + $0x38] sm:$0xf]
    %v440 = vld [vmem:[%s5 + $0x3c] sm:$0xf]
    %v441 = vld [vmem:[%s6] sm:$0x1]
    %v443 = vlaneseq
    %v444 = vshrl.u32 %v443, 7
    %v445 = vsub.s32 0, %v444
    %v446 = vrot.slane %v441, %v445
    %v464 = vunpack.c.l.b16 %v425
    %v465 = vunpack.c.l.b16 %v426
    %v466 = vunpack.c.l.b16 %v427
    %v467 = vunpack.c.l.b16 %v428
    %v468 = vunpack.c.l.b16 %v429
    %v469 = vunpack.c.l.b16 %v430
    %v470 = vunpack.c.l.b16 %v431
    %v471 = vunpack.c.l.b16 %v432
    %v472 = vunpack.c.l.b16 %v433
    %v473 = vunpack.c.l.b16 %v434
    %v474 = vunpack.c.l.b16 %v435
    %v475 = vunpack.c.l.b16 %v436
    %v476 = vunpack.c.l.b16 %v437
    %v477 = vunpack.c.l.b16 %v438
    %v478 = vunpack.c.l.b16 %v439
    %v479 = vunpack.c.l.b16 %v440
    %v480 = vpack.c.b16 %v465, %v464
    %v481 = vpack.c.b16 %v467, %v466
    %v482 = vpack.c.b16 %v469, %v468
    %v483 = vpack.c.b16 %v471, %v470
    %v484 = vpack.c.b16 %v473, %v472
    %v485 = vpack.c.b16 %v475, %v474
    %v486 = vpack.c.b16 %v477, %v476
    %v487 = vpack.c.b16 %v479, %v478
    %496 = vmatprep.subr.bf16.mxu0 0
    %497 = vmatpush1.bf16.msra.mxu0 %v480
    %498 = vmatprep.subr.bf16.mxu0 0
    %499 = vmatpush1.bf16.msra.mxu0 %v481
    %500 = vmatprep.subr.bf16.mxu0 0
    %501 = vmatpush1.bf16.msra.mxu0 %v482
    %502 = vmatprep.subr.bf16.mxu0 0
    %503 = vmatpush1.bf16.msra.mxu0 %v483
    %504 = vmatprep.subr.bf16.mxu0 0
    %505 = vmatpush1.bf16.msra.mxu0 %v484
    %506 = vmatprep.subr.bf16.mxu0 0
    %507 = vmatpush1.bf16.msra.mxu0 %v485
    %508 = vmatprep.subr.bf16.mxu0 0
    %509 = vmatpush1.bf16.msra.mxu0 %v486
    %510 = vmatprep.subr.bf16.mxu0 0
    %511 = vmatpush1.bf16.msra.mxu0 %v487
    %512 = vmatprep.subr.bf16.mxu0 0
    %513 = vmatpush1.bf16.msra.mxu0 0
    %514 = vmatprep.subr.bf16.mxu0 0
    %515 = vmatpush1.bf16.msra.mxu0 0
    %516 = vmatprep.subr.bf16.mxu0 0
    %517 = vmatpush1.bf16.msra.mxu0 0
    %518 = vmatprep.subr.bf16.mxu0 0
    %519 = vmatpush1.bf16.msra.mxu0 0
    %520 = vmatprep.subr.bf16.mxu0 0
    %521 = vmatpush1.bf16.msra.mxu0 0
    %522 = vmatprep.subr.bf16.mxu0 0
    %523 = vmatpush1.bf16.msra.mxu0 0
    %524 = vmatprep.subr.bf16.mxu0 0
    %525 = vmatpush1.bf16.msra.mxu0 0
    %526 = vmatprep.subr.bf16.mxu0 0
    %527 = vmatpush1.bf16.msra.mxu0 0
    %528 = vmatprep.mubr.bf16.mxu0 0
    %529 = vmatmul.mubr.bf16.gmra.mrb[0].mxu0 %v424
    %v530 = vpop.f32.mrb[0].mxu0
    %v531 = vadd.f32 %v446, %v530
    %v532 = vpop.f32.mrb[0].mxu0
    %v533 = vpop.f32.mrb[0].mxu0
    %v534 = vpop.f32.mrb[0].mxu0
    %535 = vdwg.mxu0
    %536 = vst [vmem:[#allocation2] sm:$0xff] %v531
    // Predicated region
    $region30: #{fnetwork_forward.1} parent=1 // pred_check
      _
    $region31: #{fnetwork_forward.1} parent=1 // pred_check_branch
      %538 = sbr.rel (0) target = $region33
    $region32: #{fnetwork_forward.1} parent=1 // pred_region
      %s540 = ssub.s32 128, 128
      %541 = vsyncadd [#allocation3], %s540
      %s543 = sshll.u32 [#allocation2], 4
      %s544 = int_to_ptr.vmem [resolvable:$true] %s543
      %546 = dma.vmem_to_hbm [thread:$0]  %s544, 128, %s7, [#allocation3]
    $region33: #{fnetwork_forward.1} parent=1 // pred_fallthru
      _
    // Predicated region
    $region34: #{fnetwork_forward.1} parent=1 // pred_check
      _
    $region35: #{fnetwork_forward.1} parent=1 // pred_check_branch
      %548 = sbr.rel (0) target = $region37
    $region36: #{fnetwork_forward.1} parent=1 // pred_region
      %549 = dma.done [#allocation3], 128
    $region37: #{fnetwork_forward.1} parent=1 // pred_fallthru
      _
    %550 = vsyncpa [#allocation3], 1

</llo_original>
